<compile_context>
chip_gen: v7x
topology: tpu7x:2x2x1
jax: 0.10.0
libtpu: 0.0.40
codegen_flags: <defaults>
</compile_context>

<pallas_src>
import jax
import jax.numpy as jnp
from jax.experimental import pallas as pl
from jax.experimental.pallas import tpu as pltpu


def _round_up(x, m):
    return ((x + m - 1) // m) * m


def _vmem_limit(block_bytes):
    # Double-buffered blocks + headroom, clamped so the request is legal on
    # v5e/v6e (128 MiB physical) and v7x (64 MiB physical).
    return int(min(max(4 * block_bytes, 16 * 2**20), 48 * 2**20))


# ----------------------------------------------------------------------------
# Kernel 1: fused multi-head GAT attention over one tile of dst rows.
# ----------------------------------------------------------------------------
def _gat_fused_heads_kernel(x_ref, w_ref, logit_ref, adj_ref, o_ref):
    # x_ref     : [Nn, in_dim]   bf16  neighbor node features (tile-invariant)
    # w_ref     : [in_dim, H*dh] bf16  all heads' fc weights, head-major columns
    # logit_ref : [H, td, Nn]    f32   precomputed attention logits (src + edge feat)
    # adj_ref   : [td, Nn]       f32   0/1 adjacency mask (dst x src)
    # o_ref     : [td, H*dh]     f32   concatenated head outputs (lane-dense store)
    H = logit_ref.shape[0]
    dh = o_ref.shape[-1] // H

    # One fused, lane-dense MXU matmul covering every head's fc projection.
    z = jnp.dot(x_ref[...], w_ref[...], preferred_element_type=jnp.float32)  # [Nn, H*dh]
    z_bf = z.astype(jnp.bfloat16)

    adj = adj_ref[...]
    heads = []
    for h in range(H):                                    # H is small and static
        e = logit_ref[h]                                  # [td, Nn]
        e = jnp.where(e > 0, e, 0.01 * e)                 # F.leaky_relu (slope 0.01)
        e = jnp.where(adj > 0.0, e, -1e30)                # edge_softmax mask
        m = jnp.max(e, axis=-1, keepdims=True)
        p = jnp.exp(e - m)                                # masked entries underflow to 0
        denom = jnp.sum(p, axis=-1, keepdims=True)
        alpha = p * pl.reciprocal(denom, approx=True)     # EUP reciprocal (free slot)
        heads.append(jnp.dot(alpha.astype(jnp.bfloat16),
                             z_bf[:, h * dh:(h + 1) * dh],
                             preferred_element_type=jnp.float32))
    o_ref[...] = jnp.concatenate(heads, axis=-1)          # single lane-dense store


def _run_gat(neighbor_bf, w_all_bf, logits_p, adj_p, td):
    Nn, in_dim = neighbor_bf.shape
    D = w_all_bf.shape[1]
    H, Nd_pad, _ = logits_p.shape
    block_bytes = (Nn * in_dim * 2 + in_dim * D * 2
                   + (H * td * Nn + td * Nn + td * D) * 4)
    return pl.pallas_call(
        _gat_fused_heads_kernel,
        out_shape=jax.ShapeDtypeStruct((Nd_pad, D), jnp.float32),
        grid_spec=pltpu.PrefetchScalarGridSpec(
            num_scalar_prefetch=0,
            grid=(Nd_pad // td,),
            in_specs=[
                pl.BlockSpec((Nn, in_dim), lambda i: (0, 0)),   # tile-invariant
                pl.BlockSpec((in_dim, D), lambda i: (0, 0)),    # tile-invariant
                pl.BlockSpec((H, td, Nn), lambda i: (0, i, 0)),
                pl.BlockSpec((td, Nn), lambda i: (i, 0)),
            ],
            out_specs=pl.BlockSpec((td, D), lambda i: (i, 0)),
        ),
        compiler_params=pltpu.CompilerParams(
            dimension_semantics=("parallel",),
            vmem_limit_bytes=_vmem_limit(block_bytes)),
    )(neighbor_bf, w_all_bf, logits_p, adj_p)


# ----------------------------------------------------------------------------
# Kernel 2: elu + residual + PositionwiseFeedForward (LN -> gelu MLP -> residual),
#           row-tiled with resident weights.
# ----------------------------------------------------------------------------
def _elu_res_ffn_kernel(hgat_ref, orig_ref, g_ref, b_ref, w1_ref, b1_ref,
                        w2_ref, b2_ref, o_ref):
    hg = hgat_ref[...]
    h = jnp.where(hg > 0, hg, jnp.expm1(jnp.minimum(hg, 0.0)))                  # F.elu
    x = h + orig_ref[...]                                                       # + origin

    mu = jnp.mean(x, axis=-1, keepdims=True)
    var = jnp.mean((x - mu) ** 2, axis=-1, keepdims=True)
    ln = (x - mu) * jax.lax.rsqrt(var + 1e-6) * g_ref[...] + b_ref[...]         # LayerNorm(eps=1e-6)

    inter = jnp.dot(ln.astype(jnp.bfloat16), w1_ref[...],
                    preferred_element_type=jnp.float32) + b1_ref[...]
    c = 0.7978845608028654  # sqrt(2/pi)
    inter = 0.5 * inter * (1.0 + jnp.tanh(c * (inter + 0.044715 * inter ** 3)))  # gelu (tanh approx)

    out = jnp.dot(inter.astype(jnp.bfloat16), w2_ref[...],
                  preferred_element_type=jnp.float32) + b2_ref[...]
    o_ref[...] = out + x                                                         # FFN residual


def _run_ffn(h_gat_p, origin_p, gamma, beta, w1_bf, b1, w2_bf, b2, td):
    Nd_pad, D = h_gat_p.shape
    Fi = w1_bf.shape[1]
    block_bytes = (3 * td * D * 4 + 3 * D * 4 + Fi * 4 + (D * Fi + Fi * D) * 2)
    return pl.pallas_call(
        _elu_res_ffn_kernel,
        out_shape=jax.ShapeDtypeStruct((Nd_pad, D), jnp.float32),
        grid_spec=pltpu.PrefetchScalarGridSpec(
            num_scalar_prefetch=0,
            grid=(Nd_pad // td,),
            in_specs=[
                pl.BlockSpec((td, D), lambda i: (i, 0)),
                pl.BlockSpec((td, D), lambda i: (i, 0)),
                pl.BlockSpec((1, D), lambda i: (0, 0)),      # resident params
                pl.BlockSpec((1, D), lambda i: (0, 0)),
                pl.BlockSpec((D, Fi), lambda i: (0, 0)),
                pl.BlockSpec((1, Fi), lambda i: (0, 0)),
                pl.BlockSpec((Fi, D), lambda i: (0, 0)),
                pl.BlockSpec((1, D), lambda i: (0, 0)),
            ],
            out_specs=pl.BlockSpec((td, D), lambda i: (i, 0)),
        ),
        compiler_params=pltpu.CompilerParams(
            dimension_semantics=("parallel",),
            vmem_limit_bytes=_vmem_limit(block_bytes)),
    )(h_gat_p, origin_p, gamma[None, :], beta[None, :], w1_bf, b1[None, :],
      w2_bf, b2[None, :])


# ----------------------------------------------------------------------------
# WSWGAT wrapper (glue) + deterministic parameter init
# ----------------------------------------------------------------------------
def init_params(key, in_dim, out_dim, num_heads, ffn_inner, feat_embed):
    dh = out_dim // num_heads
    ks = jax.random.split(key, 10)
    p = {}
    p["W"] = jax.random.normal(ks[0], (num_heads, in_dim, dh), jnp.float32) / jnp.sqrt(in_dim)
    p["Wf"] = jax.random.normal(ks[1], (num_heads, feat_embed, dh), jnp.float32) / jnp.sqrt(feat_embed)
    p["bf"] = 0.1 * jax.random.normal(ks[2], (num_heads, dh), jnp.float32)
    a = jax.random.normal(ks[3], (num_heads, 2 * dh), jnp.float32) / jnp.sqrt(2 * dh)
    p["a1"] = a[:, :dh]          # applied to z_src
    p["a2"] = a[:, dh:]          # applied to feat_fc(edge_feat)
    # fold feat_fc with attn vector (exact linear composition)
    p["v_feat"] = jnp.einsum("hfd,hd->hf", p["Wf"], p["a2"])
    p["b_feat"] = jnp.einsum("hd,hd->h", p["bf"], p["a2"])
    # FFN
    p["gamma"] = 1.0 + 0.1 * jax.random.normal(ks[4], (out_dim,), jnp.float32)
    p["beta"] = 0.1 * jax.random.normal(ks[5], (out_dim,), jnp.float32)
    p["W1"] = jax.random.normal(ks[6], (out_dim, ffn_inner), jnp.float32) / jnp.sqrt(out_dim)
    p["b1"] = 0.1 * jax.random.normal(ks[7], (ffn_inner,), jnp.float32)
    p["W2"] = jax.random.normal(ks[8], (ffn_inner, out_dim), jnp.float32) / jnp.sqrt(ffn_inner)
    p["b2"] = 0.1 * jax.random.normal(ks[9], (out_dim,), jnp.float32)
    return p


def wswgat_forward(params, adj, edge_feat, w, s, layer_type="W2S", block_d=128):
    if layer_type == "W2S":
        origin, neighbor = s, w
    elif layer_type == "S2W":
        origin, neighbor = w, s
    elif layer_type == "S2S":
        origin, neighbor = s, s
    else:
        raise NotImplementedError("GAT Layer has not been implemented!")

    H, in_dim, dh = params["W"].shape
    Nd, Nn = adj.shape
    D = H * dh
    assert block_d % 8 == 0

    # ---- XLA-side precompute (exact linear folds; keeps the kernel lane-dense) ----
    # All heads' fc weights fused head-major:  z_all[:, h*dh:(h+1)*dh] = neighbor @ W[h]
    w_all = jnp.transpose(params["W"], (1, 0, 2)).reshape(in_dim, D)
    # src attention contribution folded through fc:  u[i,h] = sum_d W[h,i,d] * a1[h,d]
    u = jnp.einsum("hid,hd->ih", params["W"], params["a1"])
    src = neighbor @ u                                                        # [Nn, H]
    # edge-feature contribution (feat_fc folded with attn vector):  [H, Nd, Nn]
    feat = (jnp.einsum("dnf,hf->hdn", edge_feat, params["v_feat"])
            + params["b_feat"][:, None, None])
    logits = feat + jnp.transpose(src)[:, None, :]        # pre-leakyrelu attention logits

    # ---- pad dst axis to a multiple of the row tile (padded rows sliced off) ----
    td = min(block_d, _round_up(Nd, 8))
    Nd_pad = _round_up(Nd, td)
    pad = Nd_pad - Nd
    adj_p = jnp.pad(adj.astype(jnp.float32), ((0, pad), (0, 0)))
    logits_p = jnp.pad(logits, ((0, 0), (0, pad), (0, 0)))
    origin_p = jnp.pad(origin, ((0, pad), (0, 0)))

    # ---- kernel 1: fused multi-head attention, lane-dense [Nd_pad, H*dh] out ----
    h_gat = _run_gat(neighbor.astype(jnp.bfloat16), w_all.astype(jnp.bfloat16),
                     logits_p, adj_p, td)

    # TODO(synk): the elu+residual+FFN epilogue could be fused into the tail of
    #             the GAT kernel to avoid one HBM round trip of h_gat.
    out_p = _run_ffn(h_gat, origin_p, params["gamma"], params["beta"],
                     params["W1"].astype(jnp.bfloat16), params["b1"],
                     params["W2"].astype(jnp.bfloat16), params["b2"], td)
    return out_p[:Nd]


# Pure-JAX reference (mirrors PyTorch semantics, f32) for verification.
def reference_forward(params, adj, edge_feat, w, s, layer_type="W2S"):
    origin, neighbor = (s, w) if layer_type == "W2S" else ((w, s) if layer_type == "S2W" else (s, s))
    H = params["W"].shape[0]
    heads = []
    for h in range(H):
        z = neighbor @ params["W"][h]
        dfeat = jnp.einsum("dnf,fo->dno", edge_feat, params["Wf"][h]) + params["bf"][h]
        e = jnp.einsum("no,o->n", z, params["a1"][h])[None, :] + jnp.einsum("dno,o->dn", dfeat, params["a2"][h])
        e = jnp.where(e > 0, e, 0.01 * e)
        e = jnp.where(adj > 0, e, -1e30)
        p = jnp.exp(e - e.max(-1, keepdims=True)) * adj
        alpha = p / jnp.maximum(p.sum(-1, keepdims=True), 1e-9)
        heads.append(alpha @ z)
    x = jax.nn.elu(jnp.concatenate(heads, axis=-1)) + origin
    mu = x.mean(-1, keepdims=True)
    var = ((x - mu) ** 2).mean(-1, keepdims=True)
    ln = (x - mu) / jnp.sqrt(var + 1e-6) * params["gamma"] + params["beta"]
    inter = ln @ params["W1"] + params["b1"]
    inter = 0.5 * inter * (1.0 + jnp.tanh(0.7978845608028654 * (inter + 0.044715 * inter ** 3)))
    return inter @ params["W2"] + params["b2"] + x


if __name__ == "__main__":
    # Small W2S configuration: word nodes -> sentence nodes.
    # Ns=20 with block_d=8 exercises the row-tiled grid (3 tiles) and padding.
    Nw, Ns = 16, 20
    in_dim, out_dim, num_heads = 16, 32, 4
    feat_embed, ffn_inner = 8, 64

    key = jax.random.PRNGKey(0)
    ks = jax.random.split(key, 6)
    w = jax.random.normal(ks[0], (Nw, in_dim), jnp.float32)       # word node feats
    s = jax.random.normal(ks[1], (Ns, out_dim), jnp.float32)      # sentence node feats
    adj = (jax.random.uniform(ks[2], (Ns, Nw)) < 0.5).astype(jnp.float32)
    adj = adj.at[:, 0].set(1.0)                                   # every dst has >=1 edge
    edge_feat = 0.1 * jax.random.normal(ks[3], (Ns, Nw, feat_embed), jnp.float32)
    params = init_params(ks[4], in_dim, out_dim, num_heads, ffn_inner, feat_embed)

    out = wswgat_forward(params, adj, edge_feat, w, s, layer_type="W2S", block_d=8)
    out = jax.block_until_ready(out)

    ref = reference_forward(params, adj, edge_feat, w, s, layer_type="W2S")
    assert out.shape == (Ns, out_dim)
    assert bool(jnp.all(jnp.isfinite(out)))
    # bf16 matmul operands with f32 accumulation -> slightly looser tolerance.
    assert jnp.allclose(out, ref, atol=5e-2, rtol=5e-2), float(jnp.max(jnp.abs(out - ref)))

    print("KERNEL_OK")
</pallas_src>

<mosaic_0001>
module attributes {stable_mosaic.version = 11 : i64} {
  func.func @_gat_fused_heads_kernel(%arg0: i32, %arg1: memref<16x16xbf16, #tpu.memory_space<vmem>>, %arg2: memref<16x32xbf16, #tpu.memory_space<vmem>>, %arg3: memref<4x8x16xf32, #tpu.memory_space<vmem>>, %arg4: memref<8x16xf32, #tpu.memory_space<vmem>>, %arg5: memref<8x32xf32, #tpu.memory_space<vmem>>) attributes {dimension_semantics = [#tpu.dimension_semantics<parallel>], iteration_bounds = array<i64: 3>, scalar_prefetch = 0 : i64, scratch_operands = 0 : i64, tpu.core_type = #tpu.core_type<tc>, window_params = [{pipeline_mode = #tpu.pipeline_mode<synchronous>, transform_indices = @transform_0, window_bounds = array<i64: 16, 16>}, {pipeline_mode = #tpu.pipeline_mode<synchronous>, transform_indices = @transform_1, window_bounds = array<i64: 16, 32>}, {transform_indices = @transform_2, window_bounds = array<i64: 4, 8, 16>}, {transform_indices = @transform_3, window_bounds = array<i64: 8, 16>}, {transform_indices = @transform_4, window_bounds = array<i64: 8, 32>}]} {
    %c0 = arith.constant 0 : index
    %c0_0 = arith.constant 0 : index
    %0 = vector.load %arg1[%c0, %c0_0] : memref<16x16xbf16, #tpu.memory_space<vmem>>, vector<16x16xbf16>
    %c0_1 = arith.constant 0 : index
    %c0_2 = arith.constant 0 : index
    %1 = vector.load %arg2[%c0_1, %c0_2] : memref<16x32xbf16, #tpu.memory_space<vmem>>, vector<16x32xbf16>
    %cst = arith.constant dense<0.000000e+00> : vector<16x32xf32>
    %2 = tpu.matmul %0, %1, %cst {dimension_numbers = #tpu.dot_dimension_numbers<[1], [0], [0], [1], [0, 0, 1, 1], [], []>} : vector<16x16xbf16>, vector<16x32xbf16>, vector<16x32xf32> -> vector<16x32xf32>
    %3 = arith.truncf %2 : vector<16x32xf32> to vector<16x32xbf16>
    %c0_3 = arith.constant 0 : index
    %c0_4 = arith.constant 0 : index
    %4 = vector.load %arg4[%c0_3, %c0_4] : memref<8x16xf32, #tpu.memory_space<vmem>>, vector<8x16xf32>
    %c0_5 = arith.constant 0 : index
    %c0_6 = arith.constant 0 : index
    %c0_7 = arith.constant 0 : index
    %5 = vector.load %arg3[%c0_5, %c0_6, %c0_7] : memref<4x8x16xf32, #tpu.memory_space<vmem>>, vector<1x8x16xf32>
    %6 = vector.shape_cast %5 : vector<1x8x16xf32> to vector<8x16xf32>
    %cst_8 = arith.constant 0.000000e+00 : f32
    %7 = vector.broadcast %cst_8 : f32 to vector<8x16xf32>
    %8 = arith.cmpf ogt, %6, %7 : vector<8x16xf32>
    %cst_9 = arith.constant 0.00999999977 : f32
    %9 = vector.broadcast %cst_9 : f32 to vector<8x16xf32>
    %10 = arith.mulf %9, %6 : vector<8x16xf32>
    %11 = arith.select %8, %6, %10 : vector<8x16xi1>, vector<8x16xf32>
    %cst_10 = arith.constant 0.000000e+00 : f32
    %12 = vector.broadcast %cst_10 : f32 to vector<8x16xf32>
    %13 = arith.cmpf ogt, %4, %12 : vector<8x16xf32>
    %cst_11 = arith.constant -1.000000e+30 : f32
    %14 = vector.broadcast %cst_11 : f32 to vector<8x16xf32>
    %15 = arith.select %13, %11, %14 : vector<8x16xi1>, vector<8x16xf32>
    %cst_12 = arith.constant dense<0xFF800000> : vector<8xf32>
    %16 = vector.multi_reduction <maximumf>, %15, %cst_12 [1] : vector<8x16xf32> to vector<8xf32>
    %17 = vector.shape_cast %16 : vector<8xf32> to vector<8x1xf32>
    %18 = vector.broadcast %17 : vector<8x1xf32> to vector<8x16xf32>
    %19 = arith.subf %15, %18 : vector<8x16xf32>
    %20 = math.exp %19 : vector<8x16xf32>
    %cst_13 = arith.constant dense<0.000000e+00> : vector<8xf32>
    %21 = vector.multi_reduction <add>, %20, %cst_13 [1] : vector<8x16xf32> to vector<8xf32>
    %22 = vector.shape_cast %21 : vector<8xf32> to vector<8x1xf32>
    %23 = tpu.reciprocal %22 {approx = true} : vector<8x1xf32> -> vector<8x1xf32>
    %24 = vector.broadcast %23 : vector<8x1xf32> to vector<8x16xf32>
    %25 = arith.mulf %20, %24 : vector<8x16xf32>
    %26 = arith.truncf %25 : vector<8x16xf32> to vector<8x16xbf16>
    %27 = vector.extract_strided_slice %3 {offsets = [0, 0], sizes = [16, 8], strides = [1, 1]} : vector<16x32xbf16> to vector<16x8xbf16>
    %cst_14 = arith.constant dense<0.000000e+00> : vector<8x8xf32>
    %28 = tpu.matmul %26, %27, %cst_14 {dimension_numbers = #tpu.dot_dimension_numbers<[1], [0], [0], [1], [0, 0, 1, 1], [], []>} : vector<8x16xbf16>, vector<16x8xbf16>, vector<8x8xf32> -> vector<8x8xf32>
    %c1 = arith.constant 1 : index
    %c0_15 = arith.constant 0 : index
    %c0_16 = arith.constant 0 : index
    %29 = vector.load %arg3[%c1, %c0_15, %c0_16] : memref<4x8x16xf32, #tpu.memory_space<vmem>>, vector<1x8x16xf32>
    %30 = vector.shape_cast %29 : vector<1x8x16xf32> to vector<8x16xf32>
    %cst_17 = arith.constant 0.000000e+00 : f32
    %31 = vector.broadcast %cst_17 : f32 to vector<8x16xf32>
    %32 = arith.cmpf ogt, %30, %31 : vector<8x16xf32>
    %cst_18 = arith.constant 0.00999999977 : f32
    %33 = vector.broadcast %cst_18 : f32 to vector<8x16xf32>
    %34 = arith.mulf %33, %30 : vector<8x16xf32>
    %35 = arith.select %32, %30, %34 : vector<8x16xi1>, vector<8x16xf32>
    %cst_19 = arith.constant 0.000000e+00 : f32
    %36 = vector.broadcast %cst_19 : f32 to vector<8x16xf32>
    %37 = arith.cmpf ogt, %4, %36 : vector<8x16xf32>
    %cst_20 = arith.constant -1.000000e+30 : f32
    %38 = vector.broadcast %cst_20 : f32 to vector<8x16xf32>
    %39 = arith.select %37, %35, %38 : vector<8x16xi1>, vector<8x16xf32>
    %cst_21 = arith.constant dense<0xFF800000> : vector<8xf32>
    %40 = vector.multi_reduction <maximumf>, %39, %cst_21 [1] : vector<8x16xf32> to vector<8xf32>
    %41 = vector.shape_cast %40 : vector<8xf32> to vector<8x1xf32>
    %42 = vector.broadcast %41 : vector<8x1xf32> to vector<8x16xf32>
    %43 = arith.subf %39, %42 : vector<8x16xf32>
    %44 = math.exp %43 : vector<8x16xf32>
    %cst_22 = arith.constant dense<0.000000e+00> : vector<8xf32>
    %45 = vector.multi_reduction <add>, %44, %cst_22 [1] : vector<8x16xf32> to vector<8xf32>
    %46 = vector.shape_cast %45 : vector<8xf32> to vector<8x1xf32>
    %47 = tpu.reciprocal %46 {approx = true} : vector<8x1xf32> -> vector<8x1xf32>
    %48 = vector.broadcast %47 : vector<8x1xf32> to vector<8x16xf32>
    %49 = arith.mulf %44, %48 : vector<8x16xf32>
    %50 = arith.truncf %49 : vector<8x16xf32> to vector<8x16xbf16>
    %51 = vector.extract_strided_slice %3 {offsets = [0, 8], sizes = [16, 8], strides = [1, 1]} : vector<16x32xbf16> to vector<16x8xbf16>
    %cst_23 = arith.constant dense<0.000000e+00> : vector<8x8xf32>
    %52 = tpu.matmul %50, %51, %cst_23 {dimension_numbers = #tpu.dot_dimension_numbers<[1], [0], [0], [1], [0, 0, 1, 1], [], []>} : vector<8x16xbf16>, vector<16x8xbf16>, vector<8x8xf32> -> vector<8x8xf32>
    %c2 = arith.constant 2 : index
    %c0_24 = arith.constant 0 : index
    %c0_25 = arith.constant 0 : index
    %53 = vector.load %arg3[%c2, %c0_24, %c0_25] : memref<4x8x16xf32, #tpu.memory_space<vmem>>, vector<1x8x16xf32>
    %54 = vector.shape_cast %53 : vector<1x8x16xf32> to vector<8x16xf32>
    %cst_26 = arith.constant 0.000000e+00 : f32
    %55 = vector.broadcast %cst_26 : f32 to vector<8x16xf32>
    %56 = arith.cmpf ogt, %54, %55 : vector<8x16xf32>
    %cst_27 = arith.constant 0.00999999977 : f32
    %57 = vector.broadcast %cst_27 : f32 to vector<8x16xf32>
    %58 = arith.mulf %57, %54 : vector<8x16xf32>
    %59 = arith.select %56, %54, %58 : vector<8x16xi1>, vector<8x16xf32>
    %cst_28 = arith.constant 0.000000e+00 : f32
    %60 = vector.broadcast %cst_28 : f32 to vector<8x16xf32>
    %61 = arith.cmpf ogt, %4, %60 : vector<8x16xf32>
    %cst_29 = arith.constant -1.000000e+30 : f32
    %62 = vector.broadcast %cst_29 : f32 to vector<8x16xf32>
    %63 = arith.select %61, %59, %62 : vector<8x16xi1>, vector<8x16xf32>
    %cst_30 = arith.constant dense<0xFF800000> : vector<8xf32>
    %64 = vector.multi_reduction <maximumf>, %63, %cst_30 [1] : vector<8x16xf32> to vector<8xf32>
    %65 = vector.shape_cast %64 : vector<8xf32> to vector<8x1xf32>
    %66 = vector.broadcast %65 : vector<8x1xf32> to vector<8x16xf32>
    %67 = arith.subf %63, %66 : vector<8x16xf32>
    %68 = math.exp %67 : vector<8x16xf32>
    %cst_31 = arith.constant dense<0.000000e+00> : vector<8xf32>
    %69 = vector.multi_reduction <add>, %68, %cst_31 [1] : vector<8x16xf32> to vector<8xf32>
    %70 = vector.shape_cast %69 : vector<8xf32> to vector<8x1xf32>
    %71 = tpu.reciprocal %70 {approx = true} : vector<8x1xf32> -> vector<8x1xf32>
    %72 = vector.broadcast %71 : vector<8x1xf32> to vector<8x16xf32>
    %73 = arith.mulf %68, %72 : vector<8x16xf32>
    %74 = arith.truncf %73 : vector<8x16xf32> to vector<8x16xbf16>
    %75 = vector.extract_strided_slice %3 {offsets = [0, 16], sizes = [16, 8], strides = [1, 1]} : vector<16x32xbf16> to vector<16x8xbf16>
    %cst_32 = arith.constant dense<0.000000e+00> : vector<8x8xf32>
    %76 = tpu.matmul %74, %75, %cst_32 {dimension_numbers = #tpu.dot_dimension_numbers<[1], [0], [0], [1], [0, 0, 1, 1], [], []>} : vector<8x16xbf16>, vector<16x8xbf16>, vector<8x8xf32> -> vector<8x8xf32>
    %c3 = arith.constant 3 : index
    %c0_33 = arith.constant 0 : index
    %c0_34 = arith.constant 0 : index
    %77 = vector.load %arg3[%c3, %c0_33, %c0_34] : memref<4x8x16xf32, #tpu.memory_space<vmem>>, vector<1x8x16xf32>
    %78 = vector.shape_cast %77 : vector<1x8x16xf32> to vector<8x16xf32>
    %cst_35 = arith.constant 0.000000e+00 : f32
    %79 = vector.broadcast %cst_35 : f32 to vector<8x16xf32>
    %80 = arith.cmpf ogt, %78, %79 : vector<8x16xf32>
    %cst_36 = arith.constant 0.00999999977 : f32
    %81 = vector.broadcast %cst_36 : f32 to vector<8x16xf32>
    %82 = arith.mulf %81, %78 : vector<8x16xf32>
    %83 = arith.select %80, %78, %82 : vector<8x16xi1>, vector<8x16xf32>
    %cst_37 = arith.constant 0.000000e+00 : f32
    %84 = vector.broadcast %cst_37 : f32 to vector<8x16xf32>
    %85 = arith.cmpf ogt, %4, %84 : vector<8x16xf32>
    %cst_38 = arith.constant -1.000000e+30 : f32
    %86 = vector.broadcast %cst_38 : f32 to vector<8x16xf32>
    %87 = arith.select %85, %83, %86 : vector<8x16xi1>, vector<8x16xf32>
    %cst_39 = arith.constant dense<0xFF800000> : vector<8xf32>
    %88 = vector.multi_reduction <maximumf>, %87, %cst_39 [1] : vector<8x16xf32> to vector<8xf32>
    %89 = vector.shape_cast %88 : vector<8xf32> to vector<8x1xf32>
    %90 = vector.broadcast %89 : vector<8x1xf32> to vector<8x16xf32>
    %91 = arith.subf %87, %90 : vector<8x16xf32>
    %92 = math.exp %91 : vector<8x16xf32>
    %cst_40 = arith.constant dense<0.000000e+00> : vector<8xf32>
    %93 = vector.multi_reduction <add>, %92, %cst_40 [1] : vector<8x16xf32> to vector<8xf32>
    %94 = vector.shape_cast %93 : vector<8xf32> to vector<8x1xf32>
    %95 = tpu.reciprocal %94 {approx = true} : vector<8x1xf32> -> vector<8x1xf32>
    %96 = vector.broadcast %95 : vector<8x1xf32> to vector<8x16xf32>
    %97 = arith.mulf %92, %96 : vector<8x16xf32>
    %98 = arith.truncf %97 : vector<8x16xf32> to vector<8x16xbf16>
    %99 = vector.extract_strided_slice %3 {offsets = [0, 24], sizes = [16, 8], strides = [1, 1]} : vector<16x32xbf16> to vector<16x8xbf16>
    %cst_41 = arith.constant dense<0.000000e+00> : vector<8x8xf32>
    %100 = tpu.matmul %98, %99, %cst_41 {dimension_numbers = #tpu.dot_dimension_numbers<[1], [0], [0], [1], [0, 0, 1, 1], [], []>} : vector<8x16xbf16>, vector<16x8xbf16>, vector<8x8xf32> -> vector<8x8xf32>
    %101 = tpu.concatenate %28, %52, %76, %100 in 1 : vector<8x8xf32>, vector<8x8xf32>, vector<8x8xf32>, vector<8x8xf32> -> vector<8x32xf32>
    %c0_42 = arith.constant 0 : index
    %c0_43 = arith.constant 0 : index
    %102 = vector.load %arg5[%c0_42, %c0_43] : memref<8x32xf32, #tpu.memory_space<vmem>>, vector<8x32xf32>
    tpu.vector_store %arg5[%c0_42, %c0_43], %101 {strides = array<i32>} : memref<8x32xf32, #tpu.memory_space<vmem>>, vector<8x32xf32>,
    return
  }
  func.func @transform_0(%arg0: i32) -> (i32, i32) {
    %c0_i32 = arith.constant 0 : i32
    %c0_i32_0 = arith.constant 0 : i32
    %c0_i32_1 = arith.constant 0 : i32
    return %c0_i32, %c0_i32_0 : i32, i32
  }
  func.func @transform_1(%arg0: i32) -> (i32, i32) {
    %c0_i32 = arith.constant 0 : i32
    %c0_i32_0 = arith.constant 0 : i32
    %c0_i32_1 = arith.constant 0 : i32
    return %c0_i32, %c0_i32_0 : i32, i32
  }
  func.func @transform_2(%arg0: i32) -> (i32, i32, i32) {
    %c0_i32 = arith.constant 0 : i32
    %c0_i32_0 = arith.constant 0 : i32
    %c0_i32_1 = arith.constant 0 : i32
    return %c0_i32, %arg0, %c0_i32_0 : i32, i32, i32
  }
  func.func @transform_3(%arg0: i32) -> (i32, i32) {
    %c0_i32 = arith.constant 0 : i32
    %c0_i32_0 = arith.constant 0 : i32
    return %arg0, %c0_i32 : i32, i32
  }
  func.func @transform_4(%arg0: i32) -> (i32, i32) {
    %c0_i32 = arith.constant 0 : i32
    %c0_i32_0 = arith.constant 0 : i32
    return %arg0, %c0_i32 : i32, i32
  }
}

</mosaic_0001>

<llo_original>
// kernel: tpu_custom_call.1
$region0: #{tpu_custom_call.1}
  #allocation0 [shape = 'u32[]', space=smem, size = 0x4, offset = 0x4, fixed_abs, tag = 'smem constant byte address 0x4 - core index']
  #allocation1 [shape = 'u32[144,128]{1,0:T(1,128)}', space=vmem, size = 0x12000, scoped, tag = 'internal scratch']
  %s0 = inlined_call_operand.vmem [shape: bf16[16,16], index: 0, kind: input, shape index: {}]
  %s1 = inlined_call_operand.vmem [shape: bf16[16,32], index: 1, kind: input, shape index: {}]
  %s2 = inlined_call_operand.vmem [shape: f32[4,24,16], index: 2, kind: input, shape index: {}]
  %s3 = inlined_call_operand.vmem [shape: f32[24,16], index: 3, kind: input, shape index: {}]
  %s4 = inlined_call_operand.hbm [shape: f32[24,32], index: 4, kind: output, shape index: {}]
  %s5 = sld [smem:[#allocation0]]
  $region87: #{tpu_custom_call.1} parent=0
    _
  %s7 = ssub.s32 1, %s5
  %s8 = scalar_select 0, %s7, %s5
  $region1: #{tpu_custom_call.1} parent=0
    #allocation2 [shape = 'u8[32768]{0}', space=vmem, size = 0x8000, scoped, tag = 'input window, operand 2']
    #allocation3 [shape = 'u8[8192]{0}', space=vmem, size = 0x2000, scoped, tag = 'output window, operand 0']
    #allocation4 [shape = 's32[2]{0}', space=sflag, size = 0x8, scoped, tag = 'scoped memory for tpu_custom_call.1']
    %9 = vsyncpa [#allocation4], 0
    %s10 = scalar_lea.sflag [#allocation4], 1
    %11 = vsyncpa %s10, 0
    loop: start=0, step=1, limit=5
    $region2: #{tpu_custom_call.1} parent=1 // loop_pre_header
      _
    $region3: #{tpu_custom_call.1} parent=1 // loop_header
      %s13 = sphi 0, %s17
      %p14 = scmp.ge.s32.totalorder %s13, 5
      %s21 = sphi 0, %s21
      %s23 = sphi 0, %s21
      %s24 = sphi 0, %s23
      %s38 = sphi 0, %s24
      %s42 = sphi 0, %s42
      %s44 = sphi 0, %s42
      %s45 = sphi 0, %s44
      %s59 = sphi 0, %s45
      %s65 = sphi 0, %s67
      %s68 = sphi 0, %s65
      %s69 = sphi 0, %s68
      %s85 = sphi 0, %s69
      %s91 = sphi 0, %s93
      %s94 = sphi 0, %s91
      %s95 = sphi 0, %s94
      %s111 = sphi 0, %s95
      %s117 = sphi 0, %s119
      %s120 = sphi 0, %s117
      %s121 = sphi 0, %s120
      %s137 = sphi 0, %s121
    $region4: #{tpu_custom_call.1} parent=1 // loop_header_branch
      %16 = sbr.rel (%p14) target = $region8
    $region5: #{tpu_custom_call.1} parent=1 // loop_body
      %s18 = ssub.s32 %s13, 1
      %s19 = ssub.s32 %s13, 2
      %s20 = sadd.s32 %s13, 1
      %s22 = sadd.s32 %s21, 1
      %p25 = scmp.eq.s32.totalorder %s13, 2
      %p26 = scmp.ne.s32.totalorder %s21, %s23
      %p27 = scmp.eq.s32.totalorder %s13, 0
      %p28 = por %p26, %p27
      %p29 = scmp.ne.s32.totalorder %s21, %s23
      %p30 = scmp.eq.s32.totalorder %s18, 2
      %p31 = por %p29, %p30
      %p32 = scmp.ne.s32.totalorder %s23, %s24
      %p33 = scmp.eq.s32.totalorder %s18, 0
      %p34 = por %p32, %p33
      %p35 = scmp.ne.s32.totalorder %s23, %s24
      %p36 = scmp.eq.s32.totalorder %s19, 2
      %p37 = por %p35, %p36
      %p39 = scmp.ne.s32.totalorder %s24, %s38
      %p40 = scmp.eq.s32.totalorder %s19, 0
      %p41 = por %p39, %p40
      %s43 = sadd.s32 %s42, 1
      %p46 = scmp.eq.s32.totalorder %s13, 2
      %p47 = scmp.ne.s32.totalorder %s42, %s44
      %p48 = scmp.eq.s32.totalorder %s13, 0
      %p49 = por %p47, %p48
      %p50 = scmp.ne.s32.totalorder %s42, %s44
      %p51 = scmp.eq.s32.totalorder %s18, 2
      %p52 = por %p50, %p51
      %p53 = scmp.ne.s32.totalorder %s44, %s45
      %p54 = scmp.eq.s32.totalorder %s18, 0
      %p55 = por %p53, %p54
      %p56 = scmp.ne.s32.totalorder %s44, %s45
      %p57 = scmp.eq.s32.totalorder %s19, 2
      %p58 = por %p56, %p57
      %p60 = scmp.ne.s32.totalorder %s45, %s59
      %p61 = scmp.eq.s32.totalorder %s19, 0
      %p62 = por %p60, %p61
      %s63 = ssub.s32 %s13, %s20
      %p64 = scmp.eq.s32.totalorder %s63, 0
      %s66 = sadd.s32 %s65, 1
      %s67 = scalar_select %p64, %s65, %s66
      %p70 = pneg %p64
      %p71 = scmp.eq.s32.totalorder %s13, 2
      %p72 = por %p70, %p71
      %p73 = scmp.ne.s32.totalorder %s65, %s68
      %p74 = scmp.eq.s32.totalorder %s13, 0
      %p75 = por %p73, %p74
      %p76 = scmp.ne.s32.totalorder %s65, %s68
      %p77 = scmp.eq.s32.totalorder %s18, 2
      %p78 = por %p76, %p77
      %p79 = scmp.ne.s32.totalorder %s68, %s69
      %p80 = scmp.eq.s32.totalorder %s18, 0
      %p81 = por %p79, %p80
      %p82 = scmp.ne.s32.totalorder %s68, %s69
      %p83 = scmp.eq.s32.totalorder %s19, 2
      %p84 = por %p82, %p83
      %p86 = scmp.ne.s32.totalorder %s69, %s85
      %p87 = scmp.eq.s32.totalorder %s19, 0
      %p88 = por %p86, %p87
      %s89 = ssub.s32 %s13, %s20
      %p90 = scmp.eq.s32.totalorder %s89, 0
      %s92 = sadd.s32 %s91, 1
      %s93 = scalar_select %p90, %s91, %s92
      %p96 = pneg %p90
      %p97 = scmp.eq.s32.totalorder %s13, 2
      %p98 = por %p96, %p97
      %p99 = scmp.ne.s32.totalorder %s91, %s94
      %p100 = scmp.eq.s32.totalorder %s13, 0
      %p101 = por %p99, %p100
      %p102 = scmp.ne.s32.totalorder %s91, %s94
      %p103 = scmp.eq.s32.totalorder %s18, 2
      %p104 = por %p102, %p103
      %p105 = scmp.ne.s32.totalorder %s94, %s95
      %p106 = scmp.eq.s32.totalorder %s18, 0
      %p107 = por %p105, %p106
      %p108 = scmp.ne.s32.totalorder %s94, %s95
      %p109 = scmp.eq.s32.totalorder %s19, 2
      %p110 = por %p108, %p109
      %p112 = scmp.ne.s32.totalorder %s95, %s111
      %p113 = scmp.eq.s32.totalorder %s19, 0
      %p114 = por %p112, %p113
      %s115 = ssub.s32 %s13, %s20
      %p116 = scmp.eq.s32.totalorder %s115, 0
      %s118 = sadd.s32 %s117, 1
      %s119 = scalar_select %p116, %s117, %s118
      %p122 = pneg %p116
      %p123 = scmp.eq.s32.totalorder %s13, 2
      %p124 = por %p122, %p123
      %p125 = scmp.ne.s32.totalorder %s117, %s120
      %p126 = scmp.eq.s32.totalorder %s13, 0
      %p127 = por %p125, %p126
      %p128 = scmp.ne.s32.totalorder %s117, %s120
      %p129 = scmp.eq.s32.totalorder %s18, 2
      %p130 = por %p128, %p129
      %p131 = scmp.ne.s32.totalorder %s120, %s121
      %p132 = scmp.eq.s32.totalorder %s18, 0
      %p133 = por %p131, %p132
      %p134 = scmp.ne.s32.totalorder %s120, %s121
      %p135 = scmp.eq.s32.totalorder %s19, 2
      %p136 = por %p134, %p135
      %p138 = scmp.ne.s32.totalorder %s121, %s137
      %p139 = scmp.eq.s32.totalorder %s19, 0
      %p140 = por %p138, %p139
      %p141 = scmp.le.s32.totalorder 1, %s13
      %p142 = scmp.lt.s32.totalorder %s13, 4
      %p143 = pnand %p141, %p142
      %p144 = pneg %p143
      // Predicated region
      $region9: #{tpu_custom_call.1} parent=5 // pred_check
        _
      $region10: #{tpu_custom_call.1} parent=5 // pred_check_branch
        %146 = sbr.rel (%p143) target = $region12
      $region11: #{tpu_custom_call.1} parent=5 // pred_region
        %s147 = ssub.s32 %s13, 1
        // Predicated region
        $region13: #{tpu_custom_call.1} parent=11 // pred_check
          %p148 = pneg %p34
        $region14: #{tpu_custom_call.1} parent=11 // pred_check_branch
          %150 = sbr.rel (%p148) target = $region16
        $region15: #{tpu_custom_call.1} parent=11 // pred_region
          _
        $region16: #{tpu_custom_call.1} parent=11 // pred_fallthru
          _
        // Predicated region
        $region17: #{tpu_custom_call.1} parent=11 // pred_check
          %p151 = pneg %p55
        $region18: #{tpu_custom_call.1} parent=11 // pred_check_branch
          %153 = sbr.rel (%p151) target = $region20
        $region19: #{tpu_custom_call.1} parent=11 // pred_region
          _
        $region20: #{tpu_custom_call.1} parent=11 // pred_fallthru
          _
      $region12: #{tpu_custom_call.1} parent=5 // pred_fallthru
        _
      %p154 = scmp.lt.s32.totalorder %s13, 3
      // Predicated region
      $region21: #{tpu_custom_call.1} parent=5 // pred_check
        %p155 = pneg %p154
      $region22: #{tpu_custom_call.1} parent=5 // pred_check_branch
        %157 = sbr.rel (%p155) target = $region24
      $region23: #{tpu_custom_call.1} parent=5 // pred_region
        // Predicated region
        $region25: #{tpu_custom_call.1} parent=23 // pred_check
          %p158 = pneg %p75
        $region26: #{tpu_custom_call.1} parent=23 // pred_check_branch
          %160 = sbr.rel (%p158) target = $region28
        $region27: #{tpu_custom_call.1} parent=23 // pred_region
          %s161 = sand.u32 %s65, 1
          %s162 = sand.u32 %s65, 1
          %s163 = smul.addr %s162, 32
          %s164 = scalar_lea.vmem [#allocation2], %s163
          %s165 = smul.addr %s13, 8
          %s166 = scalar_lea.vmem %s2, %s165
          // Predicated region
          $region29: #{tpu_custom_call.1} parent=27 // pred_check
            _
          $region30: #{tpu_custom_call.1} parent=27 // pred_check_branch
            %168 = sbr.rel (0) target = $region32
          $region31: #{tpu_custom_call.1} parent=27 // pred_region
            // Predicated region
            $region33: #{tpu_custom_call.1} parent=31 // pred_check
              _
            $region34: #{tpu_custom_call.1} parent=31 // pred_check_branch
              %170 = sbr.rel (0) target = $region36
            $region35: #{tpu_custom_call.1} parent=31 // pred_region
              // Predicated region
              $region48: #{tpu_custom_call.1} parent=35 // pred_check
                _
              $region49: #{tpu_custom_call.1} parent=35 // pred_check_branch
                %191 = sbr.rel (0) target = $region51
              $region50: #{tpu_custom_call.1} parent=35 // pred_region
                loop: start=0, step=1, limit=1
                $region52: #{tpu_custom_call.1} parent=50 // loop_pre_header
                  _
                $region53: #{tpu_custom_call.1} parent=50 // loop_header
                  %s193 = sphi 0, %s197
                  %p194 = scmp.ge.s32.totalorder %s193, 1
                  %s198 = sphi %s166, %s166
                  %s199 = sphi %s164, %s164
                $region54: #{tpu_custom_call.1} parent=50 // loop_header_branch
                  %196 = sbr.rel (%p194) target = $region58
                $region55: #{tpu_custom_call.1} parent=50 // loop_body
                  %v200 = vld [vmem:[%s198] sm:$0xff]
                  %201 = vst [vmem:[%s199] sm:$0xff] %v200
                  %v202 = vld [vmem:[%s198 + $0x18] sm:$0xff]
                  %203 = vst [vmem:[%s199 + $0x8] sm:$0xff] %v202
                  %v204 = vld [vmem:[%s198 + $0x30] sm:$0xff]
                  %205 = vst [vmem:[%s199 + $0x10] sm:$0xff] %v204
                  %v206 = vld [vmem:[%s198 + $0x48] sm:$0xff]
                  %207 = vst [vmem:[%s199 + $0x18] sm:$0xff] %v206
                $region56: #{tpu_custom_call.1} parent=50 // loop_footer
                  %s197 = sadd.s32 1, %s193
                $region57: #{tpu_custom_call.1} parent=50 // loop_footer_branch
                  %192 = sbr.rel target = $region53
                $region58: #{tpu_custom_call.1} parent=50 // loop_exit
                  _
              $region51: #{tpu_custom_call.1} parent=35 // pred_fallthru
                _
              // Predicated region
              $region59: #{tpu_custom_call.1} parent=35 // pred_check
                _
              $region60: #{tpu_custom_call.1} parent=35 // pred_check_branch
                %209 = sbr.rel target = $region62
              $region61: #{tpu_custom_call.1} parent=35 // pred_region
                _
              $region62: #{tpu_custom_call.1} parent=35 // pred_fallthru
                _
            $region36: #{tpu_custom_call.1} parent=31 // pred_fallthru
              _
            // Predicated region
            $region37: #{tpu_custom_call.1} parent=31 // pred_check
              _
            $region38: #{tpu_custom_call.1} parent=31 // pred_check_branch
              %172 = sbr.rel target = $region40
            $region39: #{tpu_custom_call.1} parent=31 // pred_region
              loop: start=0, step=1, limit=1
              $region41: #{tpu_custom_call.1} parent=39 // loop_pre_header
                _
              $region42: #{tpu_custom_call.1} parent=39 // loop_header
                %s175 = sphi 0, %s179
                %p176 = scmp.ge.s32.totalorder %s175, 1
                %s180 = sphi %s166, %s166
                %s181 = sphi %s164, %s164
              $region43: #{tpu_custom_call.1} parent=39 // loop_header_branch
                %178 = sbr.rel (%p176) target = $region47
              $region44: #{tpu_custom_call.1} parent=39 // loop_body
                %v182 = vld [vmem:[%s180] sm:$0xff]
                %183 = vst [vmem:[%s181] sm:$0xff] %v182
                %v184 = vld [vmem:[%s180 + $0x18] sm:$0xff]
                %185 = vst [vmem:[%s181 + $0x8] sm:$0xff] %v184
                %v186 = vld [vmem:[%s180 + $0x30] sm:$0xff]
                %187 = vst [vmem:[%s181 + $0x10] sm:$0xff] %v186
                %v188 = vld [vmem:[%s180 + $0x48] sm:$0xff]
                %189 = vst [vmem:[%s181 + $0x18] sm:$0xff] %v188
              $region45: #{tpu_custom_call.1} parent=39 // loop_footer
                %s179 = sadd.s32 1, %s175
              $region46: #{tpu_custom_call.1} parent=39 // loop_footer_branch
                %174 = sbr.rel target = $region42
              $region47: #{tpu_custom_call.1} parent=39 // loop_exit
                _
            $region40: #{tpu_custom_call.1} parent=31 // pred_fallthru
              _
          $region32: #{tpu_custom_call.1} parent=27 // pred_fallthru
            _
          %210 = vnop
        $region28: #{tpu_custom_call.1} parent=23 // pred_fallthru
          _
        // Predicated region
        $region63: #{tpu_custom_call.1} parent=23 // pred_check
          %p211 = pneg %p101
        $region64: #{tpu_custom_call.1} parent=23 // pred_check_branch
          %213 = sbr.rel (%p211) target = $region66
        $region65: #{tpu_custom_call.1} parent=23 // pred_region
          %p214 = scmp.lt.s32.totalorder %s13, 2
          %s215 = scalar_select %p214, %s13, 2
          %s216 = smul.addr %s215, 8
          %s217 = scalar_lea.vmem %s3, %s216
        $region66: #{tpu_custom_call.1} parent=23 // pred_fallthru
          _
      $region24: #{tpu_custom_call.1} parent=5 // pred_fallthru
        _
      %p218 = scmp.le.s32.totalorder 1, %s13
      %p219 = scmp.lt.s32.totalorder %s13, 4
      %p220 = pnand %p218, %p219
      %p221 = pneg %p220
      // Predicated region
      $region67: #{tpu_custom_call.1} parent=5 // pred_check
        _
      $region68: #{tpu_custom_call.1} parent=5 // pred_check_branch
        %223 = sbr.rel (%p220) target = $region70
      $region69: #{tpu_custom_call.1} parent=5 // pred_region
        %s224 = ssub.s32 %s13, 1
        %s225 = sand.u32 %s68, 1
        %s226 = sand.u32 %s68, 1
        %s227 = smul.addr %s226, 32
        %s228 = scalar_lea.vmem [#allocation2], %s227
        // Predicated region
        $region71: #{tpu_custom_call.1} parent=69 // pred_check
          %p229 = pneg %p81
        $region72: #{tpu_custom_call.1} parent=69 // pred_check_branch
          %231 = sbr.rel (%p229) target = $region74
        $region73: #{tpu_custom_call.1} parent=69 // pred_region
          _
        $region74: #{tpu_custom_call.1} parent=69 // pred_fallthru
          _
        %p232 = pneg %p34
        %p233 = pneg %p31
        %p234 = pneg %p55
        %p235 = pneg %p52
        %s236 = sand.u32 %s68, 1
        %s237 = sand.u32 %s68, 1
        %s238 = smul.addr %s237, 32
        %s239 = scalar_lea.vmem [#allocation2], %s238
        %p240 = pneg %p81
        %p241 = pneg %p78
        %p242 = scmp.lt.s32.totalorder %s18, 2
        %s243 = scalar_select %p242, %s18, 2
        %s244 = smul.addr %s243, 8
        %s245 = scalar_lea.vmem %s3, %s244
        %p246 = pneg %p107
        %p247 = pneg %p104
        %p248 = pneg %p133
        %p249 = pneg %p130
        %s250 = sand.u32 %s120, 1
        %s251 = scalar_lea.sflag [#allocation4], %s250
        %s252 = sand.u32 %s120, 1
        %s253 = smul.addr %s252, 8
        %s254 = scalar_lea.vmem [#allocation3], %s253
        %p255 = scmp.lt.s32.totalorder %s18, 2
        %s256 = scalar_select %p255, %s18, 2
        %s257 = smul.addr %s256, 8
        %s258 = scalar_lea.vmem %s3, %s257
        %v260 = vld [vmem:[%s0] sm:$0xf]
        %v261 = vld [vmem:[%s0 + $0x4] sm:$0xf]
        %v262 = vld [vmem:[%s1] sm:$0xf]
        %v263 = vld [vmem:[%s1 + $0x4] sm:$0xf]
        %v266 = vunpack.c.l.b16 %v260
        %v267 = vunpack.c.l.b16 %v261
        %v268 = vpack.c.b16 %v267, %v266
        %v271 = vunpack.c.l.b16 %v262
        %v272 = vunpack.c.l.b16 %v263
        %v273 = vpack.c.b16 %v272, %v271
        %vm275 = vcmask 130048
        %v277 = vsel %vm275, %v268, 0
        %279 = vmatprep.subr.bf16.mxu0 0
        %280 = vmatpush1.bf16.msra.mxu0 %v273
        %281 = vmatprep.subr.bf16.mxu0 0
        %282 = vmatpush1.bf16.msra.mxu0 0
        %283 = vmatprep.subr.bf16.mxu0 0
        %284 = vmatpush1.bf16.msra.mxu0 0
        %285 = vmatprep.subr.bf16.mxu0 0
        %286 = vmatpush1.bf16.msra.mxu0 0
        %287 = vmatprep.subr.bf16.mxu0 0
        %288 = vmatpush1.bf16.msra.mxu0 0
        %289 = vmatprep.subr.bf16.mxu0 0
        %290 = vmatpush1.bf16.msra.mxu0 0
        %291 = vmatprep.subr.bf16.mxu0 0
        %292 = vmatpush1.bf16.msra.mxu0 0
        %293 = vmatprep.subr.bf16.mxu0 0
        %294 = vmatpush1.bf16.msra.mxu0 0
        %295 = vmatprep.subr.bf16.mxu0 0
        %296 = vmatpush1.bf16.msra.mxu0 0
        %297 = vmatprep.subr.bf16.mxu0 0
        %298 = vmatpush1.bf16.msra.mxu0 0
        %299 = vmatprep.subr.bf16.mxu0 0
        %300 = vmatpush1.bf16.msra.mxu0 0
        %301 = vmatprep.subr.bf16.mxu0 0
        %302 = vmatpush1.bf16.msra.mxu0 0
        %303 = vmatprep.subr.bf16.mxu0 0
        %304 = vmatpush1.bf16.msra.mxu0 0
        %305 = vmatprep.subr.bf16.mxu0 0
        %306 = vmatpush1.bf16.msra.mxu0 0
        %307 = vmatprep.subr.bf16.mxu0 0
        %308 = vmatpush1.bf16.msra.mxu0 0
        %309 = vmatprep.subr.bf16.mxu0 0
        %310 = vmatpush1.bf16.msra.mxu0 0
        %311 = vmatprep.mubr.bf16.mxu0 0
        %312 = vmatmul.mubr.bf16.gmra.mrb[0].mxu0 %v277
        %v313 = vpop.f32.mrb[0].mxu0
        %v314 = vadd.f32 0.0, %v313
        %v315 = vpop.f32.mrb[0].mxu0
        %v316 = vpop.f32.mrb[0].mxu0
        %v317 = vadd.f32 0.0, %v316
        %v318 = vpop.f32.mrb[0].mxu0
        %319 = vdwg.mxu0
        %v320 = vpack.c.bf16 %v317, %v314
        %v321 = vld [vmem:[%s258] sm:$0xff]
        %v322 = vld [vmem:[%s228] sm:$0xff]
        %vm323 = vcmp.gt.f32.partialorder %v322, 0.0
        %v324 = vmul.f32 %v322, 0.01
        %v325 = vsel %vm323, %v322, %v324
        %vm326 = vcmp.gt.f32.partialorder %v321, 0.0
        %v327 = vsel %vm326, %v325, -1e+30
        %v328 = vsel %vm275, %v327, -inf
        %329 = vmax.xlane.f32.xlu0 %v328
        %v330 = vpop.xlane.xlu0 %329
        %v331 = vsub.f32 %v327, %v330
        %v332 = vmul.f32 %v331, 1.442695
        %v333 = vpow.pop %v332
        %v334 = vsel %vm275, %v333, 0.0
        %335 = vadd.xlane.f32.xlu0 %v334
        %v336 = vpop.xlane.xlu0 %335
        %v337 = vrcp.pop %v336
        %v338 = vmul.f32 %v333, %v337
        %v339 = vpack.c.bf16 %v338, %v338
        %v341 = vsel %vm275, %v339, 0
        %343 = vmatprep.subr.bf16.mxu0 0
        %344 = vmatpush1.bf16.msra.mxu0 %v320
        %345 = vmatprep.subr.bf16.mxu0 0
        %346 = vmatpush1.bf16.msra.mxu0 0
        %347 = vmatprep.subr.bf16.mxu0 0
        %348 = vmatpush1.bf16.msra.mxu0 0
        %349 = vmatprep.subr.bf16.mxu0 0
        %350 = vmatpush1.bf16.msra.mxu0 0
        %351 = vmatprep.subr.bf16.mxu0 0
        %352 = vmatpush1.bf16.msra.mxu0 0
        %353 = vmatprep.subr.bf16.mxu0 0
        %354 = vmatpush1.bf16.msra.mxu0 0
        %355 = vmatprep.subr.bf16.mxu0 0
        %356 = vmatpush1.bf16.msra.mxu0 0
        %357 = vmatprep.subr.bf16.mxu0 0
        %358 = vmatpush1.bf16.msra.mxu0 0
        %359 = vmatprep.subr.bf16.mxu0 0
        %360 = vmatpush1.bf16.msra.mxu0 0
        %361 = vmatprep.subr.bf16.mxu0 0
        %362 = vmatpush1.bf16.msra.mxu0 0
        %363 = vmatprep.subr.bf16.mxu0 0
        %364 = vmatpush1.bf16.msra.mxu0 0
        %365 = vmatprep.subr.bf16.mxu0 0
        %366 = vmatpush1.bf16.msra.mxu0 0
        %367 = vmatprep.subr.bf16.mxu0 0
        %368 = vmatpush1.bf16.msra.mxu0 0
        %369 = vmatprep.subr.bf16.mxu0 0
        %370 = vmatpush1.bf16.msra.mxu0 0
        %371 = vmatprep.subr.bf16.mxu0 0
        %372 = vmatpush1.bf16.msra.mxu0 0
        %373 = vmatprep.subr.bf16.mxu0 0
        %374 = vmatpush1.bf16.msra.mxu0 0
        %375 = vmatprep.mubr.bf16.mxu0 0
        %376 = vmatmul.mubr.bf16.gmra.mrb[0].mxu0 %v341
        %v377 = vpop.f32.mrb[0].mxu0
        %v378 = vadd.f32 0.0, %v377
        %v379 = vpop.f32.mrb[0].mxu0
        %v380 = vpop.f32.mrb[0].mxu0
        %v381 = vpop.f32.mrb[0].mxu0
        %382 = vdwg.mxu0
        %s383 = scalar_lea.vmem %s228, 8 [#allocation2]
        %v384 = vld [vmem:[%s383] sm:$0xff]
        %vm385 = vcmp.gt.f32.partialorder %v384, 0.0
        %v386 = vmul.f32 %v384, 0.01
        %v387 = vsel %vm385, %v384, %v386
        %v388 = vsel %vm326, %v387, -1e+30
        %v389 = vsel %vm275, %v388, -inf
        %390 = vmax.xlane.f32.xlu0 %v389
        %v391 = vpop.xlane.xlu0 %390
        %v392 = vsub.f32 %v388, %v391
        %v393 = vmul.f32 %v392, 1.442695
        %v394 = vpow.pop %v393
        %v395 = vsel %vm275, %v394, 0.0
        %396 = vadd.xlane.f32.xlu0 %v395
        %v397 = vpop.xlane.xlu0 %396
        %v398 = vrcp.pop %v397
        %v399 = vmul.f32 %v394, %v398
        %v400 = vpack.c.bf16 %v399, %v399
        %402 = vrot.lane.b32.xlu0 %v320, 120
        %v403 = vpop.permute.xlu0 %402
        %v406 = vsel %vm275, %v400, 0
        %408 = vmatprep.subr.bf16.mxu0 0
        %409 = vmatpush1.bf16.msra.mxu0 %v403
        %410 = vmatprep.subr.bf16.mxu0 0
        %411 = vmatpush1.bf16.msra.mxu0 0
        %412 = vmatprep.subr.bf16.mxu0 0
        %413 = vmatpush1.bf16.msra.mxu0 0
        %414 = vmatprep.subr.bf16.mxu0 0
        %415 = vmatpush1.bf16.msra.mxu0 0
        %416 = vmatprep.subr.bf16.mxu0 0
        %417 = vmatpush1.bf16.msra.mxu0 0
        %418 = vmatprep.subr.bf16.mxu0 0
        %419 = vmatpush1.bf16.msra.mxu0 0
        %420 = vmatprep.subr.bf16.mxu0 0
        %421 = vmatpush1.bf16.msra.mxu0 0
        %422 = vmatprep.subr.bf16.mxu0 0
        %423 = vmatpush1.bf16.msra.mxu0 0
        %424 = vmatprep.subr.bf16.mxu0 0
        %425 = vmatpush1.bf16.msra.mxu0 0
        %426 = vmatprep.subr.bf16.mxu0 0
        %427 = vmatpush1.bf16.msra.mxu0 0
        %428 = vmatprep.subr.bf16.mxu0 0
        %429 = vmatpush1.bf16.msra.mxu0 0
        %430 = vmatprep.subr.bf16.mxu0 0
        %431 = vmatpush1.bf16.msra.mxu0 0
        %432 = vmatprep.subr.bf16.mxu0 0
        %433 = vmatpush1.bf16.msra.mxu0 0
        %434 = vmatprep.subr.bf16.mxu0 0
        %435 = vmatpush1.bf16.msra.mxu0 0
        %436 = vmatprep.subr.bf16.mxu0 0
        %437 = vmatpush1.bf16.msra.mxu0 0
        %438 = vmatprep.subr.bf16.mxu0 0
        %439 = vmatpush1.bf16.msra.mxu0 0
        %440 = vmatprep.mubr.bf16.mxu0 0
        %441 = vmatmul.mubr.bf16.gmra.mrb[0].mxu0 %v406
        %v442 = vpop.f32.mrb[0].mxu0
        %v443 = vadd.f32 0.0, %v442
        %v444 = vpop.f32.mrb[0].mxu0
        %v445 = vpop.f32.mrb[0].mxu0
        %v446 = vpop.f32.mrb[0].mxu0
        %447 = vdwg.mxu0
        %s448 = scalar_lea.vmem %s228, 16 [#allocation2]
        %v449 = vld [vmem:[%s448] sm:$0xff]
        %vm450 = vcmp.gt.f32.partialorder %v449, 0.0
        %v451 = vmul.f32 %v449, 0.01
        %v452 = vsel %vm450, %v449, %v451
        %v453 = vsel %vm326, %v452, -1e+30
        %v454 = vsel %vm275, %v453, -inf
        %455 = vmax.xlane.f32.xlu0 %v454
        %v456 = vpop.xlane.xlu0 %455
        %v457 = vsub.f32 %v453, %v456
        %v458 = vmul.f32 %v457, 1.442695
        %v459 = vpow.pop %v458
        %v460 = vsel %vm275, %v459, 0.0
        %461 = vadd.xlane.f32.xlu0 %v460
        %v462 = vpop.xlane.xlu0 %461
        %v463 = vrcp.pop %v462
        %v464 = vmul.f32 %v459, %v463
        %v465 = vpack.c.bf16 %v464, %v464
        %466 = vrot.lane.b32.xlu0 %v320, 112
        %v467 = vpop.permute.xlu0 %466
        %v470 = vsel %vm275, %v465, 0
        %472 = vmatprep.subr.bf16.mxu0 0
        %473 = vmatpush1.bf16.msra.mxu0 %v467
        %474 = vmatprep.subr.bf16.mxu0 0
        %475 = vmatpush1.bf16.msra.mxu0 0
        %476 = vmatprep.subr.bf16.mxu0 0
        %477 = vmatpush1.bf16.msra.mxu0 0
        %478 = vmatprep.subr.bf16.mxu0 0
        %479 = vmatpush1.bf16.msra.mxu0 0
        %480 = vmatprep.subr.bf16.mxu0 0
        %481 = vmatpush1.bf16.msra.mxu0 0
        %482 = vmatprep.subr.bf16.mxu0 0
        %483 = vmatpush1.bf16.msra.mxu0 0
        %484 = vmatprep.subr.bf16.mxu0 0
        %485 = vmatpush1.bf16.msra.mxu0 0
        %486 = vmatprep.subr.bf16.mxu0 0
        %487 = vmatpush1.bf16.msra.mxu0 0
        %488 = vmatprep.subr.bf16.mxu0 0
        %489 = vmatpush1.bf16.msra.mxu0 0
        %490 = vmatprep.subr.bf16.mxu0 0
        %491 = vmatpush1.bf16.msra.mxu0 0
        %492 = vmatprep.subr.bf16.mxu0 0
        %493 = vmatpush1.bf16.msra.mxu0 0
        %494 = vmatprep.subr.bf16.mxu0 0
        %495 = vmatpush1.bf16.msra.mxu0 0
        %496 = vmatprep.subr.bf16.mxu0 0
        %497 = vmatpush1.bf16.msra.mxu0 0
        %498 = vmatprep.subr.bf16.mxu0 0
        %499 = vmatpush1.bf16.msra.mxu0 0
        %500 = vmatprep.subr.bf16.mxu0 0
        %501 = vmatpush1.bf16.msra.mxu0 0
        %502 = vmatprep.subr.bf16.mxu0 0
        %503 = vmatpush1.bf16.msra.mxu0 0
        %504 = vmatprep.mubr.bf16.mxu0 0
        %505 = vmatmul.mubr.bf16.gmra.mrb[0].mxu0 %v470
        %v506 = vpop.f32.mrb[0].mxu0
        %v507 = vadd.f32 0.0, %v506
        %v508 = vpop.f32.mrb[0].mxu0
        %v509 = vpop.f32.mrb[0].mxu0
        %v510 = vpop.f32.mrb[0].mxu0
        %511 = vdwg.mxu0
        %s512 = scalar_lea.vmem %s228, 24 [#allocation2]
        %v513 = vld [vmem:[%s512] sm:$0xff]
        %vm514 = vcmp.gt.f32.partialorder %v513, 0.0
        %v515 = vmul.f32 %v513, 0.01
        %v516 = vsel %vm514, %v513, %v515
        %v517 = vsel %vm326, %v516, -1e+30
        %v518 = vsel %vm275, %v517, -inf
        %519 = vmax.xlane.f32.xlu0 %v518
        %v520 = vpop.xlane.xlu0 %519
        %v521 = vsub.f32 %v517, %v520
        %v522 = vmul.f32 %v521, 1.442695
        %v523 = vpow.pop %v522
        %v524 = vsel %vm275, %v523, 0.0
        %525 = vadd.xlane.f32.xlu0 %v524
        %v526 = vpop.xlane.xlu0 %525
        %v527 = vrcp.pop %v526
        %v528 = vmul.f32 %v523, %v527
        %v529 = vpack.c.bf16 %v528, %v528
        %530 = vrot.lane.b32.xlu0 %v320, 104
        %v531 = vpop.permute.xlu0 %530
        %v534 = vsel %vm275, %v529, 0
        %536 = vmatprep.subr.bf16.mxu0 0
        %537 = vmatpush1.bf16.msra.mxu0 %v531
        %538 = vmatprep.subr.bf16.mxu0 0
        %539 = vmatpush1.bf16.msra.mxu0 0
        %540 = vmatprep.subr.bf16.mxu0 0
        %541 = vmatpush1.bf16.msra.mxu0 0
        %542 = vmatprep.subr.bf16.mxu0 0
        %543 = vmatpush1.bf16.msra.mxu0 0
        %544 = vmatprep.subr.bf16.mxu0 0
        %545 = vmatpush1.bf16.msra.mxu0 0
        %546 = vmatprep.subr.bf16.mxu0 0
        %547 = vmatpush1.bf16.msra.mxu0 0
        %548 = vmatprep.subr.bf16.mxu0 0
        %549 = vmatpush1.bf16.msra.mxu0 0
        %550 = vmatprep.subr.bf16.mxu0 0
        %551 = vmatpush1.bf16.msra.mxu0 0
        %552 = vmatprep.subr.bf16.mxu0 0
        %553 = vmatpush1.bf16.msra.mxu0 0
        %554 = vmatprep.subr.bf16.mxu0 0
        %555 = vmatpush1.bf16.msra.mxu0 0
        %556 = vmatprep.subr.bf16.mxu0 0
        %557 = vmatpush1.bf16.msra.mxu0 0
        %558 = vmatprep.subr.bf16.mxu0 0
        %559 = vmatpush1.bf16.msra.mxu0 0
        %560 = vmatprep.subr.bf16.mxu0 0
        %561 = vmatpush1.bf16.msra.mxu0 0
        %562 = vmatprep.subr.bf16.mxu0 0
        %563 = vmatpush1.bf16.msra.mxu0 0
        %564 = vmatprep.subr.bf16.mxu0 0
        %565 = vmatpush1.bf16.msra.mxu0 0
        %566 = vmatprep.subr.bf16.mxu0 0
        %567 = vmatpush1.bf16.msra.mxu0 0
        %568 = vmatprep.mubr.bf16.mxu0 0
        %569 = vmatmul.mubr.bf16.gmra.mrb[0].mxu0 %v534
        %v570 = vpop.f32.mrb[0].mxu0
        %v571 = vadd.f32 0.0, %v570
        %v572 = vpop.f32.mrb[0].mxu0
        %v573 = vpop.f32.mrb[0].mxu0
        %v574 = vpop.f32.mrb[0].mxu0
        %575 = vdwg.mxu0
        %577 = vrot.lane.b32.xlu0 %v443, 8
        %v578 = vpop.permute.xlu0 %577
        %581 = vrot.lane.b32.xlu0 %v507, 16
        %v582 = vpop.permute.xlu0 %581
        %585 = vrot.lane.b32.xlu0 %v571, 24
        %v586 = vpop.permute.xlu0 %585
        %vm588 = vcmask 64512
        %v589 = vsel %vm588, %v378, %v578
        %v590 = vsel %vm275, %v589, %v582
        %vm591 = vcmask 195584
        %v592 = vsel %vm591, %v590, %v586
        %vm593 = vcmask 261120
        %594 = vst.msk [vmem:[%s254] sm:$0xff] %vm593, %v592
        %s595 = sand.u32 %s120, 1
        %s596 = scalar_lea.sflag [#allocation4], %s595
        %s597 = sand.u32 %s120, 1
        %s598 = smul.addr %s597, 8
        %s599 = scalar_lea.vmem [#allocation3], %s598
        // Predicated region
        $region75: #{tpu_custom_call.1} parent=69 // pred_check
          %p600 = pneg %p130
        $region76: #{tpu_custom_call.1} parent=69 // pred_check_branch
          %602 = sbr.rel (%p600) target = $region78
        $region77: #{tpu_custom_call.1} parent=69 // pred_region
          %s604 = ssub.s32 128, 128
          %605 = vsyncadd %s596, %s604
          %s606 = smul.addr %s18, 128
          %s607 = scalar_lea.hbm %s4, %s606
          %s609 = sshll.u32 %s599, 4
          %s610 = int_to_ptr.vmem [resolvable:$true] %s609
          %612 = dma.vmem_to_hbm [thread:$0]  %s610, 128, %s607, %s596
        $region78: #{tpu_custom_call.1} parent=69 // pred_fallthru
          _
      $region70: #{tpu_custom_call.1} parent=5 // pred_fallthru
        _
      %p613 = scmp.le.s32.totalorder 2, %s13
      // Predicated region
      $region79: #{tpu_custom_call.1} parent=5 // pred_check
        %p614 = pneg %p613
      $region80: #{tpu_custom_call.1} parent=5 // pred_check_branch
        %616 = sbr.rel (%p614) target = $region82
      $region81: #{tpu_custom_call.1} parent=5 // pred_region
        %s617 = ssub.s32 %s13, 2
        // Predicated region
        $region83: #{tpu_custom_call.1} parent=81 // pred_check
          %p618 = pneg %p136
        $region84: #{tpu_custom_call.1} parent=81 // pred_check_branch
          %620 = sbr.rel (%p618) target = $region86
        $region85: #{tpu_custom_call.1} parent=81 // pred_region
          %s621 = sand.u32 %s121, 1
          %s622 = scalar_lea.sflag [#allocation4], %s621
          %s623 = sand.u32 %s121, 1
          %s624 = smul.addr %s623, 8
          %s625 = scalar_lea.vmem [#allocation3], %s624
          %626 = dma.done %s622, 128
        $region86: #{tpu_custom_call.1} parent=81 // pred_fallthru
          _
      $region82: #{tpu_custom_call.1} parent=5 // pred_fallthru
        _
    $region6: #{tpu_custom_call.1} parent=1 // loop_footer
      %s17 = sadd.s32 1, %s13
    $region7: #{tpu_custom_call.1} parent=1 // loop_footer_branch
      %12 = sbr.rel target = $region3
    $region8: #{tpu_custom_call.1} parent=1 // loop_exit
      _
    %627 = vsyncpa [#allocation4], 1
    %s628 = scalar_lea.sflag [#allocation4], 1
    %629 = vsyncpa %s628, 1

</llo_original>
